<compile_context>
chip_gen: v5e
topology: v5e:2x2
jax: 0.10.0
libtpu: 0.0.40
codegen_flags: <defaults>
</compile_context>

<pallas_src>
import jax
import jax.numpy as jnp
from jax.experimental import pallas as pl
from jax.experimental.pallas import tpu as pltpu


def conv_graph_kernel(adj_ref, x_all_ref, x_tile_ref, ws_ref, wn_ref, bias_ref, o_ref):
    # adj_ref:    (tm, n)      degree-normalized adjacency rows for this tile (bf16)
    # x_all_ref:  (n, b*d)     all node features, nodes x (batch*feat) (bf16)
    # x_tile_ref: (tm, b*d)    this tile's own node features (self term) (bf16)
    # ws_ref:     (b*d, b*h)   block-diagonal "self" half of fc weight (bf16)
    # wn_ref:     (b*d, b*h)   block-diagonal "neighbor" half of fc weight (bf16)
    # bias_ref:   (1, b*h)     bias tiled per batch element (f32)
    # o_ref:      (tm, b*h)    f32 output rows
    neighbors = jnp.dot(adj_ref[...], x_all_ref[...],
                        preferred_element_type=jnp.float32)            # (tm, b*d) f32

    out = (jnp.dot(x_tile_ref[...], ws_ref[...],
                   preferred_element_type=jnp.float32)
           + jnp.dot(neighbors.astype(jnp.bfloat16), wn_ref[...],
                     preferred_element_type=jnp.float32)
           + bias_ref[...])                                            # (tm, b*h) f32

    o_ref[...] = jnp.maximum(out, 0.0).astype(o_ref.dtype)


def conv_graph_layer(x, adj_matrix, num_neighbors, weight, bias):
    """x: (b, n, d); adj: (n, n); num_neighbors: (n,); weight: (h, 2d); bias: (h,)."""
    b, n, d = x.shape
    h = weight.shape[0]
    assert weight.shape == (h, 2 * d)

    # (1) fold degree normalization into the adjacency (one-time O(n^2) op).
    adj_scaled = adj_matrix.astype(jnp.float32) / (
        num_neighbors.reshape(n, 1).astype(jnp.float32) + 1e-7)

    # (2) fold batch into the lane dimension: nodes x (batch*features).
    x_nbd = jnp.transpose(x, (1, 0, 2)).reshape(n, b * d)

    # (3) block-diagonal fc weights so the fused-batch layout stays in one matmul:
    #     out[:, bi*h:(bi+1)*h] = x_bi @ W_self + neighbors_bi @ W_neigh.
    w_self = jnp.transpose(weight[:, :d])     # (d, h)
    w_neigh = jnp.transpose(weight[:, d:])    # (d, h)
    eye_b = jnp.eye(b, dtype=jnp.float32)
    ws_bd = jnp.kron(eye_b, w_self)           # (b*d, b*h)
    wn_bd = jnp.kron(eye_b, w_neigh)          # (b*d, b*h)
    bias_bd = jnp.tile(bias.astype(jnp.float32), (b,)).reshape(1, b * h)

    # (4) bf16 operands for the MXU; accumulation stays f32 inside the kernel.
    adj_bf = adj_scaled.astype(jnp.bfloat16)
    x_bf = x_nbd.astype(jnp.bfloat16)
    ws_bf = ws_bd.astype(jnp.bfloat16)
    wn_bf = wn_bd.astype(jnp.bfloat16)

    # (5) row-tile the adjacency / output nodes. Full block for small graphs;
    #     256-row tiles otherwise (keeps the adj block VMEM-bounded on v7x's
    #     64 MiB and lets the 'parallel' axis shard across its two TensorCores).
    tm = n if (n <= 256 or n % 256 != 0) else 256

    grid_spec = pltpu.PrefetchScalarGridSpec(
        num_scalar_prefetch=0,
        grid=(n // tm,),
        in_specs=[
            pl.BlockSpec((tm, n), lambda i: (i, 0)),          # adj rows (tiled)
            pl.BlockSpec((n, b * d), lambda i: (0, 0)),       # x, all nodes (grid-invariant)
            pl.BlockSpec((tm, b * d), lambda i: (i, 0)),      # x, this tile (self term)
            pl.BlockSpec((b * d, b * h), lambda i: (0, 0)),   # W_self (block-diag)
            pl.BlockSpec((b * d, b * h), lambda i: (0, 0)),   # W_neigh (block-diag)
            pl.BlockSpec((1, b * h), lambda i: (0, 0)),       # bias
        ],
        out_specs=pl.BlockSpec((tm, b * h), lambda i: (i, 0)),
    )

    out_nbh = pl.pallas_call(
        conv_graph_kernel,
        out_shape=jax.ShapeDtypeStruct((n, b * h), jnp.float32),
        grid_spec=grid_spec,
        compiler_params=pltpu.CompilerParams(
            dimension_semantics=("parallel",),
            vmem_limit_bytes=32 * 1024 * 1024,
        ),
    )(adj_bf, x_bf, x_bf, ws_bf, wn_bf, bias_bd)

    # unfold the lane-packed batch back to (b, n, h) — cheap XLA layout plumbing.
    return jnp.transpose(out_nbh.reshape(n, b, h), (1, 0, 2))


def conv_graph_layer_ref(x, adj_matrix, num_neighbors, weight, bias):
    """Pure-JAX f32 reference mirroring the PyTorch forward (sparse=True path)."""
    neighbors = jnp.einsum("ij,bjd->bid", adj_matrix, x)
    neighbors = neighbors / (num_neighbors[:, None] + 1e-7)
    cat = jnp.concatenate([x, neighbors], axis=-1)
    out = cat @ weight.T + bias
    return jnp.maximum(out, 0.0)


if __name__ == "__main__":
    batch, num_nodes, input_size, hidden_size = 2, 16, 8, 32

    key = jax.random.PRNGKey(0)
    kx, kadj, kw, kb = jax.random.split(key, 4)

    x = jax.random.normal(kx, (batch, num_nodes, input_size), dtype=jnp.float32)

    # Random 0/1 adjacency (self-loops removed), shared across batch.
    adj = (jax.random.uniform(kadj, (num_nodes, num_nodes)) > 0.6).astype(jnp.float32)
    adj = adj * (1.0 - jnp.eye(num_nodes, dtype=jnp.float32))
    num_neighbors = jnp.sum(adj, axis=-1)  # (n,)

    # Deterministic "Linear(input_size*2, hidden_size)" parameters.
    weight = jax.random.normal(kw, (hidden_size, 2 * input_size), dtype=jnp.float32) * 0.1
    bias = jax.random.normal(kb, (hidden_size,), dtype=jnp.float32) * 0.1

    out = conv_graph_layer(x, adj, num_neighbors, weight, bias)
    out = jax.block_until_ready(out)

    ref = conv_graph_layer_ref(x, adj, num_neighbors, weight, bias)
    assert out.shape == (batch, num_nodes, hidden_size)
    # bf16 MXU operands -> loosened tolerance (f32 accumulation keeps it tight).
    max_err = float(jnp.max(jnp.abs(out - ref)))
    assert jnp.allclose(out, ref, atol=3e-2, rtol=3e-2), (
        f"mismatch vs reference (max abs err {max_err})")

    print("KERNEL_OK")
</pallas_src>

<mosaic_0001>
module attributes {stable_mosaic.version = 11 : i64} {
  func.func @conv_graph_kernel(%arg0: i32, %arg1: memref<16x16xbf16, #tpu.memory_space<vmem>>, %arg2: memref<16x16xbf16, #tpu.memory_space<vmem>>, %arg3: memref<16x16xbf16, #tpu.memory_space<vmem>>, %arg4: memref<16x64xbf16, #tpu.memory_space<vmem>>, %arg5: memref<16x64xbf16, #tpu.memory_space<vmem>>, %arg6: memref<1x64xf32, #tpu.memory_space<vmem>>, %arg7: memref<16x64xf32, #tpu.memory_space<vmem>>) attributes {dimension_semantics = [#tpu.dimension_semantics<parallel>], iteration_bounds = array<i64: 1>, scalar_prefetch = 0 : i64, scratch_operands = 0 : i64, tpu.core_type = #tpu.core_type<tc>, window_params = [{transform_indices = @transform_0, window_bounds = array<i64: 16, 16>}, {pipeline_mode = #tpu.pipeline_mode<synchronous>, transform_indices = @transform_1, window_bounds = array<i64: 16, 16>}, {transform_indices = @transform_2, window_bounds = array<i64: 16, 16>}, {pipeline_mode = #tpu.pipeline_mode<synchronous>, transform_indices = @transform_3, window_bounds = array<i64: 16, 64>}, {pipeline_mode = #tpu.pipeline_mode<synchronous>, transform_indices = @transform_4, window_bounds = array<i64: 16, 64>}, {pipeline_mode = #tpu.pipeline_mode<synchronous>, transform_indices = @transform_5, window_bounds = array<i64: 1, 64>}, {transform_indices = @transform_6, window_bounds = array<i64: 16, 64>}]} {
    %c0 = arith.constant 0 : index
    %c0_0 = arith.constant 0 : index
    %0 = vector.load %arg1[%c0, %c0_0] : memref<16x16xbf16, #tpu.memory_space<vmem>>, vector<16x16xbf16>
    %c0_1 = arith.constant 0 : index
    %c0_2 = arith.constant 0 : index
    %1 = vector.load %arg2[%c0_1, %c0_2] : memref<16x16xbf16, #tpu.memory_space<vmem>>, vector<16x16xbf16>
    %cst = arith.constant dense<0.000000e+00> : vector<16x16xf32>
    %2 = tpu.matmul %0, %1, %cst {dimension_numbers = #tpu.dot_dimension_numbers<[1], [0], [0], [1], [0, 0, 1, 1], [], []>} : vector<16x16xbf16>, vector<16x16xbf16>, vector<16x16xf32> -> vector<16x16xf32>
    %c0_3 = arith.constant 0 : index
    %c0_4 = arith.constant 0 : index
    %3 = vector.load %arg3[%c0_3, %c0_4] : memref<16x16xbf16, #tpu.memory_space<vmem>>, vector<16x16xbf16>
    %c0_5 = arith.constant 0 : index
    %c0_6 = arith.constant 0 : index
    %4 = vector.load %arg4[%c0_5, %c0_6] : memref<16x64xbf16, #tpu.memory_space<vmem>>, vector<16x64xbf16>
    %cst_7 = arith.constant dense<0.000000e+00> : vector<16x64xf32>
    %5 = tpu.matmul %3, %4, %cst_7 {dimension_numbers = #tpu.dot_dimension_numbers<[1], [0], [0], [1], [0, 0, 1, 1], [], []>} : vector<16x16xbf16>, vector<16x64xbf16>, vector<16x64xf32> -> vector<16x64xf32>
    %6 = arith.truncf %2 : vector<16x16xf32> to vector<16x16xbf16>
    %c0_8 = arith.constant 0 : index
    %c0_9 = arith.constant 0 : index
    %7 = vector.load %arg5[%c0_8, %c0_9] : memref<16x64xbf16, #tpu.memory_space<vmem>>, vector<16x64xbf16>
    %cst_10 = arith.constant dense<0.000000e+00> : vector<16x64xf32>
    %8 = tpu.matmul %6, %7, %cst_10 {dimension_numbers = #tpu.dot_dimension_numbers<[1], [0], [0], [1], [0, 0, 1, 1], [], []>} : vector<16x16xbf16>, vector<16x64xbf16>, vector<16x64xf32> -> vector<16x64xf32>
    %9 = arith.addf %5, %8 : vector<16x64xf32>
    %c0_11 = arith.constant 0 : index
    %c0_12 = arith.constant 0 : index
    %10 = vector.load %arg6[%c0_11, %c0_12] : memref<1x64xf32, #tpu.memory_space<vmem>>, vector<1x64xf32>
    %11 = vector.broadcast %10 : vector<1x64xf32> to vector<16x64xf32>
    %12 = arith.addf %9, %11 : vector<16x64xf32>
    %cst_13 = arith.constant 0.000000e+00 : f32
    %13 = vector.broadcast %cst_13 : f32 to vector<16x64xf32>
    %14 = arith.maximumf %12, %13 : vector<16x64xf32>
    %c0_14 = arith.constant 0 : index
    %c0_15 = arith.constant 0 : index
    %15 = vector.load %arg7[%c0_14, %c0_15] : memref<16x64xf32, #tpu.memory_space<vmem>>, vector<16x64xf32>
    tpu.vector_store %arg7[%c0_14, %c0_15], %14 {strides = array<i32>} : memref<16x64xf32, #tpu.memory_space<vmem>>, vector<16x64xf32>,
    return
  }
  func.func @transform_0(%arg0: i32) -> (i32, i32) {
    %c0_i32 = arith.constant 0 : i32
    %c0_i32_0 = arith.constant 0 : i32
    return %arg0, %c0_i32 : i32, i32
  }
  func.func @transform_1(%arg0: i32) -> (i32, i32) {
    %c0_i32 = arith.constant 0 : i32
    %c0_i32_0 = arith.constant 0 : i32
    %c0_i32_1 = arith.constant 0 : i32
    return %c0_i32, %c0_i32_0 : i32, i32
  }
  func.func @transform_2(%arg0: i32) -> (i32, i32) {
    %c0_i32 = arith.constant 0 : i32
    %c0_i32_0 = arith.constant 0 : i32
    return %arg0, %c0_i32 : i32, i32
  }
  func.func @transform_3(%arg0: i32) -> (i32, i32) {
    %c0_i32 = arith.constant 0 : i32
    %c0_i32_0 = arith.constant 0 : i32
    %c0_i32_1 = arith.constant 0 : i32
    return %c0_i32, %c0_i32_0 : i32, i32
  }
  func.func @transform_4(%arg0: i32) -> (i32, i32) {
    %c0_i32 = arith.constant 0 : i32
    %c0_i32_0 = arith.constant 0 : i32
    %c0_i32_1 = arith.constant 0 : i32
    return %c0_i32, %c0_i32_0 : i32, i32
  }
  func.func @transform_5(%arg0: i32) -> (i32, i32) {
    %c0_i32 = arith.constant 0 : i32
    %c0_i32_0 = arith.constant 0 : i32
    %c0_i32_1 = arith.constant 0 : i32
    return %c0_i32, %c0_i32_0 : i32, i32
  }
  func.func @transform_6(%arg0: i32) -> (i32, i32) {
    %c0_i32 = arith.constant 0 : i32
    %c0_i32_0 = arith.constant 0 : i32
    return %arg0, %c0_i32 : i32, i32
  }
}

</mosaic_0001>

<llo_original>
// kernel: tpu_custom_call.1
$region0: #{tpu_custom_call.1}
  #allocation0 [shape = 'u32[]', space=smem, size = 0x4, offset = 0x4, fixed_abs, tag = 'smem constant byte address 0x4 - core index']
  #allocation1 [shape = 'u32[72,128]{1,0:T(1,128)}', space=vmem, size = 0x9000, scoped, tag = 'internal scratch']
  %s0 = inlined_call_operand.hbm [shape: bf16[16,16], index: 0, kind: input, shape index: {}]
  %s1 = inlined_call_operand.hbm [shape: bf16[16,16], index: 1, kind: input, shape index: {}]
  %s2 = inlined_call_operand.hbm [shape: bf16[16,16], index: 2, kind: input, shape index: {}]
  %s3 = inlined_call_operand.hbm [shape: bf16[16,64], index: 3, kind: input, shape index: {}]
  %s4 = inlined_call_operand.hbm [shape: bf16[16,64], index: 4, kind: input, shape index: {}]
  %s5 = inlined_call_operand.vmem [shape: f32[1,64], index: 5, kind: input, shape index: {}]
  %s6 = inlined_call_operand.hbm [shape: f32[16,64], index: 6, kind: output, shape index: {}]
  %s7 = sld [smem:[#allocation0]]
  $region54: #{tpu_custom_call.1} parent=0
    _
  %s9 = ssub.s32 1, %s7
  %s10 = scalar_select 0, %s9, %s7
  $region1: #{tpu_custom_call.1} parent=0
    #allocation2 [shape = 'u8[4096]{0}', space=vmem, size = 0x1000, scoped, tag = 'input window, operand 0, single buffered']
    #allocation3 [shape = 's32[1]{0}', space=sflag, size = 0x4, scoped, tag = 'scoped memory for tpu_custom_call.1']
    #allocation4 [shape = 's32[1]{0}', space=sflag, size = 0x4, scoped, tag = 'scoped memory for tpu_custom_call.1']
    #allocation5 [shape = 'u8[4096]{0}', space=vmem, size = 0x1000, scoped, tag = 'input window, operand 1, single buffered']
    #allocation6 [shape = 's32[1]{0}', space=sflag, size = 0x4, scoped, tag = 'scoped memory for tpu_custom_call.1']
    #allocation7 [shape = 'u8[4096]{0}', space=vmem, size = 0x1000, scoped, tag = 'input window, operand 2, single buffered']
    #allocation8 [shape = 'u8[4096]{0}', space=vmem, size = 0x1000, scoped, tag = 'input window, operand 3, single buffered']
    #allocation9 [shape = 's32[1]{0}', space=sflag, size = 0x4, scoped, tag = 'scoped memory for tpu_custom_call.1']
    #allocation10 [shape = 'u8[4096]{0}', space=vmem, size = 0x1000, scoped, tag = 'input window, operand 4, single buffered']
    #allocation11 [shape = 'u8[8192]{0}', space=vmem, size = 0x2000, scoped, tag = 'output window, operand 0, single buffered']
    %11 = vsyncpa [#allocation3], 0
    %12 = vsyncpa [#allocation6], 0
    %13 = vsyncpa [#allocation9], 0
    %14 = vsyncpa [#allocation4], 0
    // Predicated region
    $region2: #{tpu_custom_call.1} parent=1 // pred_check
      _
    $region3: #{tpu_custom_call.1} parent=1 // pred_check_branch
      %16 = sbr.rel (0) target = $region5
    $region4: #{tpu_custom_call.1} parent=1 // pred_region
      %18 = vsyncadd [#allocation3], 0
      %s19 = sshll.u32 %s0, 4
      %s20 = int_to_ptr.hbm [resolvable:$true] %s19
      %s21 = sshll.u32 [#allocation2], 4
      %s22 = int_to_ptr.vmem [resolvable:$true] %s21
      %27 = dma.hbm_to_vmem [thread:$0]  %s20, 128, %s22, [#allocation3], 64, 64, 4
    $region5: #{tpu_custom_call.1} parent=1 // pred_fallthru
      _
    // Predicated region
    $region6: #{tpu_custom_call.1} parent=1 // pred_check
      _
    $region7: #{tpu_custom_call.1} parent=1 // pred_check_branch
      %29 = sbr.rel (0) target = $region9
    $region8: #{tpu_custom_call.1} parent=1 // pred_region
      %31 = vsyncadd [#allocation6], 0
      %s32 = sshll.u32 %s1, 4
      %s33 = int_to_ptr.hbm [resolvable:$true] %s32
      %s34 = sshll.u32 [#allocation5], 4
      %s35 = int_to_ptr.vmem [resolvable:$true] %s34
      %40 = dma.hbm_to_vmem [thread:$0]  %s33, 128, %s35, [#allocation6], 64, 64, 4
    $region9: #{tpu_custom_call.1} parent=1 // pred_fallthru
      _
    // Predicated region
    $region10: #{tpu_custom_call.1} parent=1 // pred_check
      _
    $region11: #{tpu_custom_call.1} parent=1 // pred_check_branch
      %42 = sbr.rel (0) target = $region13
    $region12: #{tpu_custom_call.1} parent=1 // pred_region
      %44 = vsyncadd [#allocation6], 0
      %s45 = sshll.u32 %s2, 4
      %s46 = int_to_ptr.hbm [resolvable:$true] %s45
      %s47 = sshll.u32 [#allocation7], 4
      %s48 = int_to_ptr.vmem [resolvable:$true] %s47
      %53 = dma.hbm_to_vmem [thread:$0]  %s46, 128, %s48, [#allocation6], 64, 64, 4
    $region13: #{tpu_custom_call.1} parent=1 // pred_fallthru
      _
    // Predicated region
    $region14: #{tpu_custom_call.1} parent=1 // pred_check
      _
    $region15: #{tpu_custom_call.1} parent=1 // pred_check_branch
      %55 = sbr.rel (0) target = $region17
    $region16: #{tpu_custom_call.1} parent=1 // pred_region
      %57 = vsyncadd [#allocation9], 0
      %s58 = sshll.u32 %s3, 4
      %s59 = int_to_ptr.hbm [resolvable:$true] %s58
      %s60 = sshll.u32 [#allocation8], 4
      %s61 = int_to_ptr.vmem [resolvable:$true] %s60
      %66 = dma.hbm_to_vmem [thread:$0]  %s59, 128, %s61, [#allocation9], 64, 64, 4
    $region17: #{tpu_custom_call.1} parent=1 // pred_fallthru
      _
    // Predicated region
    $region18: #{tpu_custom_call.1} parent=1 // pred_check
      _
    $region19: #{tpu_custom_call.1} parent=1 // pred_check_branch
      %68 = sbr.rel (0) target = $region21
    $region20: #{tpu_custom_call.1} parent=1 // pred_region
      %70 = vsyncadd [#allocation9], 0
      %s71 = sshll.u32 %s4, 4
      %s72 = int_to_ptr.hbm [resolvable:$true] %s71
      %s73 = sshll.u32 [#allocation10], 4
      %s74 = int_to_ptr.vmem [resolvable:$true] %s73
      %79 = dma.hbm_to_vmem [thread:$0]  %s72, 128, %s74, [#allocation9], 64, 64, 4
    $region21: #{tpu_custom_call.1} parent=1 // pred_fallthru
      _
    // Predicated region
    $region22: #{tpu_custom_call.1} parent=1 // pred_check
      _
    $region23: #{tpu_custom_call.1} parent=1 // pred_check_branch
      %81 = sbr.rel (0) target = $region25
    $region24: #{tpu_custom_call.1} parent=1 // pred_region
      _
    $region25: #{tpu_custom_call.1} parent=1 // pred_fallthru
      _
    // Predicated region
    $region26: #{tpu_custom_call.1} parent=1 // pred_check
      _
    $region27: #{tpu_custom_call.1} parent=1 // pred_check_branch
      %83 = sbr.rel (0) target = $region29
    $region28: #{tpu_custom_call.1} parent=1 // pred_region
      %85 = dma.done [#allocation3], 128
    $region29: #{tpu_custom_call.1} parent=1 // pred_fallthru
      _
    // Predicated region
    $region30: #{tpu_custom_call.1} parent=1 // pred_check
      _
    $region31: #{tpu_custom_call.1} parent=1 // pred_check_branch
      %87 = sbr.rel (0) target = $region33
    $region32: #{tpu_custom_call.1} parent=1 // pred_region
      %89 = dma.done [#allocation6], 128
    $region33: #{tpu_custom_call.1} parent=1 // pred_fallthru
      _
    // Predicated region
    $region34: #{tpu_custom_call.1} parent=1 // pred_check
      _
    $region35: #{tpu_custom_call.1} parent=1 // pred_check_branch
      %91 = sbr.rel (0) target = $region37
    $region36: #{tpu_custom_call.1} parent=1 // pred_region
      %93 = dma.done [#allocation6], 128
    $region37: #{tpu_custom_call.1} parent=1 // pred_fallthru
      _
    // Predicated region
    $region38: #{tpu_custom_call.1} parent=1 // pred_check
      _
    $region39: #{tpu_custom_call.1} parent=1 // pred_check_branch
      %95 = sbr.rel (0) target = $region41
    $region40: #{tpu_custom_call.1} parent=1 // pred_region
      %97 = dma.done [#allocation9], 128
    $region41: #{tpu_custom_call.1} parent=1 // pred_fallthru
      _
    // Predicated region
    $region42: #{tpu_custom_call.1} parent=1 // pred_check
      _
    $region43: #{tpu_custom_call.1} parent=1 // pred_check_branch
      %99 = sbr.rel (0) target = $region45
    $region44: #{tpu_custom_call.1} parent=1 // pred_region
      %101 = dma.done [#allocation9], 128
    $region45: #{tpu_custom_call.1} parent=1 // pred_fallthru
      _
    %v103 = vld [vmem:[#allocation2] sm:$0xf]
    %v104 = vld [vmem:[#allocation2 + $0x4] sm:$0xf]
    %v105 = vld [vmem:[#allocation5] sm:$0xf]
    %v106 = vld [vmem:[#allocation5 + $0x4] sm:$0xf]
    %v109 = vunpack.c.l.b16 %v103
    %v110 = vunpack.c.l.b16 %v104
    %v111 = vpack.c.b16 %v110, %v109
    %v114 = vunpack.c.l.b16 %v105
    %v115 = vunpack.c.l.b16 %v106
    %v116 = vpack.c.b16 %v115, %v114
    %vm118 = vcmask 130048
    %v120 = vsel %vm118, %v111, 0
    %122 = vmatpush.bf16.msra.mxu0 0
    %123 = vmatpush.bf16.msra.mxu0 0
    %124 = vmatpush.bf16.msra.mxu0 0
    %125 = vmatpush.bf16.msra.mxu0 0
    %126 = vmatpush.bf16.msra.mxu0 0
    %127 = vmatpush.bf16.msra.mxu0 0
    %128 = vmatpush.bf16.msra.mxu0 0
    %129 = vmatpush.bf16.msra.mxu0 %v116
    %130 = vmatmul.bf16.gmra.mxu0 %v120
    %v131 = vpop.f32.mrf.mxu0
    %v132 = vadd.f32 0.0, %v131
    %v133 = vpop.f32.mrf.mxu0
    %v134 = vadd.f32 0.0, %v133
    %135 = vdwg.mxu0
    %v136 = vld [vmem:[#allocation7] sm:$0xf]
    %v137 = vld [vmem:[#allocation7 + $0x4] sm:$0xf]
    %v138 = vld [vmem:[#allocation8] sm:$0xf]
    %v139 = vld [vmem:[#allocation8 + $0x4] sm:$0xf]
    %v140 = vpack.c.bf16 %v134, %v132
    %v141 = vld [vmem:[#allocation10] sm:$0xf]
    %v142 = vld [vmem:[#allocation10 + $0x4] sm:$0xf]
    %v145 = vunpack.c.l.b16 %v141
    %v146 = vunpack.c.l.b16 %v142
    %v147 = vpack.c.b16 %v146, %v145
    %v150 = vsel %vm118, %v140, 0
    %152 = vmatpush.bf16.msra.mxu0 0
    %153 = vmatpush.bf16.msra.mxu0 0
    %154 = vmatpush.bf16.msra.mxu0 0
    %155 = vmatpush.bf16.msra.mxu0 0
    %156 = vmatpush.bf16.msra.mxu0 0
    %157 = vmatpush.bf16.msra.mxu0 0
    %158 = vmatpush.bf16.msra.mxu0 0
    %159 = vmatpush.bf16.msra.mxu0 %v147
    %160 = vmatmul.bf16.gmra.mxu0 %v150
    %v161 = vpop.f32.mrf.mxu0
    %v162 = vadd.f32 0.0, %v161
    %v163 = vpop.f32.mrf.mxu0
    %v164 = vadd.f32 0.0, %v163
    %165 = vdwg.mxu0
    %v168 = vunpack.c.l.b16 %v136
    %v169 = vunpack.c.l.b16 %v137
    %v170 = vpack.c.b16 %v169, %v168
    %v173 = vunpack.c.l.b16 %v138
    %v174 = vunpack.c.l.b16 %v139
    %v175 = vpack.c.b16 %v174, %v173
    %v178 = vsel %vm118, %v170, 0
    %180 = vmatpush.bf16.msra.mxu0 0
    %181 = vmatpush.bf16.msra.mxu0 0
    %182 = vmatpush.bf16.msra.mxu0 0
    %183 = vmatpush.bf16.msra.mxu0 0
    %184 = vmatpush.bf16.msra.mxu0 0
    %185 = vmatpush.bf16.msra.mxu0 0
    %186 = vmatpush.bf16.msra.mxu0 0
    %187 = vmatpush.bf16.msra.mxu0 %v175
    %188 = vmatmul.bf16.gmra.mxu0 %v178
    %v189 = vpop.f32.mrf.mxu0
    %v190 = vadd.f32 %v162, %v189
    %v191 = vpop.f32.mrf.mxu0
    %v192 = vadd.f32 %v164, %v191
    %193 = vdwg.mxu0
    %v194 = vld [vmem:[%s5] sm:$0x1]
    %v196 = vperm.slane %v194, 0
    %v198 = vadd.f32 %v190, %v196
    %v199 = vadd.f32 %v192, %v196
    %v200 = vmax.f32 %v198, 0.0
    %v201 = vmax.f32 %v199, 0.0
    %vm202 = vcmask 523264
    %203 = vst.msk [vmem:[#allocation11] sm:$0xff] %vm202, %v200
    %204 = vst.msk [vmem:[#allocation11 + $0x8] sm:$0xff] %vm202, %v201
    // Predicated region
    $region46: #{tpu_custom_call.1} parent=1 // pred_check
      _
    $region47: #{tpu_custom_call.1} parent=1 // pred_check_branch
      %206 = sbr.rel (0) target = $region49
    $region48: #{tpu_custom_call.1} parent=1 // pred_region
      %208 = vsyncadd [#allocation4], 0
      %s209 = sshll.u32 [#allocation11], 4
      %s210 = int_to_ptr.vmem [resolvable:$true] %s209
      %s211 = sshll.u32 %s6, 4
      %s212 = int_to_ptr.hbm [resolvable:$true] %s211
      %217 = dma.vmem_to_hbm [thread:$0]  %s210, 256, %s212, [#allocation4], 128, 128, 8
    $region49: #{tpu_custom_call.1} parent=1 // pred_fallthru
      _
    // Predicated region
    $region50: #{tpu_custom_call.1} parent=1 // pred_check
      _
    $region51: #{tpu_custom_call.1} parent=1 // pred_check_branch
      %219 = sbr.rel (0) target = $region53
    $region52: #{tpu_custom_call.1} parent=1 // pred_region
      %221 = dma.done [#allocation4], 256
    $region53: #{tpu_custom_call.1} parent=1 // pred_fallthru
      _
    %222 = vsyncpa [#allocation3], 1
    %223 = vsyncpa [#allocation6], 1
    %224 = vsyncpa [#allocation9], 1
    %225 = vsyncpa [#allocation4], 1

</llo_original>
